<compile_context>
chip_gen: v6e
topology: v6e:2x2x1
jax: 0.10.0
libtpu: 0.0.40
codegen_flags: <defaults>
</compile_context>

<pallas_src>
import functools
import math

import jax
import jax.numpy as jnp
from jax.experimental import pallas as pl
from jax.experimental.pallas import tpu as pltpu


def _round_up(x, m):
    return ((x + m - 1) // m) * m


_VMEM_BUDGET_CACHE = None


def _vmem_budget_bytes():
    """~75% of this generation's physical VMEM (leaves compiler headroom)."""
    global _VMEM_BUDGET_CACHE
    if _VMEM_BUDGET_CACHE is None:
        phys = 64 * 1024 * 1024  # conservative default (v7x-sized)
        try:
            info = pltpu.get_tpu_info()
            phys = int(getattr(info, "vmem_capacity_bytes", phys))
        except Exception:
            pass
        _VMEM_BUDGET_CACHE = max(32 * 1024 * 1024, (phys * 3) // 4)
    return _VMEM_BUDGET_CACHE


def _plan_tiles(M, d_model, d_ff, x_bytes, w_bytes, out_bytes,
                vmem_budget, single_buffer_weights, max_tf):
    """Pick (tm, tf, resident_weights) — all static Python values."""
    M_al = _round_up(M, 16)  # 16 rows = native bf16 (16, 128) tile
    # Prefer >= 2 row tiles so the "parallel" axis can shard across v7x's
    # two TensorCores (harmless on single-TC v5e/v6e).
    tm_cap = max(16, (M_al // 2) // 16 * 16)
    tm_cands = [t for t in (1024, 512, 256, 128, 64, 32, 16) if t <= tm_cap]
    if not tm_cands:
        tm_cands = [16]

    def vmem_est(tm, tf, resident):
        n_wbuf = 1 if (resident and single_buffer_weights) else 2
        return (n_wbuf * (d_model * tf + tf * d_model) * w_bytes   # W1 + W2
                + n_wbuf * (tf + d_model) * 4                      # b1 + b2 (f32)
                + 2 * tm * d_model * x_bytes                       # x tile (2 bufs)
                + 2 * tm * d_model * out_bytes                     # out tile (2 bufs)
                + tm * d_model * 4                                 # f32 accumulator
                + tm * tf * 4)                                     # fc1 activation

    # 1) Keep full weights resident (single d_ff slice -> W1/W2 read from HBM
    #    exactly once for the whole kernel, not once per row tile).
    if d_ff <= max_tf:
        for tm in tm_cands:
            if vmem_est(tm, d_ff, True) <= vmem_budget:
                return tm, d_ff, True

    # 2) Weights don't fit resident: slice d_ff.  Large tm first (arithmetic
    #    intensity), then the largest tf that fits (fewer accumulator RMW
    #    passes and fewer per-grid-step overheads).
    tf_cap = max(128, min(d_ff, max_tf))
    for tm in tm_cands:
        for tf in (2048, 1024, 512, 256, 128):
            if tf > tf_cap:
                continue
            if vmem_est(tm, tf, False) <= vmem_budget:
                return tm, tf, False

    # 3) Last resort: smallest tiles.
    return 16, 128, False


def _ffn_kernel(x_ref, w1_ref, b1_ref, w2_ref, b2_ref, o_ref, *acc_scratch,
                mxu_dtype, acc_into_out):
    """One (row-tile i, d_ff-slice k) grid step:

         h    = relu(x_i @ W1[:, k] + b1[k])        (f32 bias / ReLU)
         acc += h @ W2[k, :]                         (f32 accumulation)
         out  = acc   (acc IS the resident o_ref block for f32 outputs)
    """
    k = pl.program_id(1)
    acc_ref = o_ref if acc_into_out else acc_scratch[0]

    @pl.when(k == 0)
    def _init():
        # Fuse the fc2 bias add into the accumulator init.
        acc_ref[...] = jnp.broadcast_to(
            b2_ref[...], acc_ref.shape).astype(acc_ref.dtype)

    # Operands are cast to the MXU dtype *inside* the kernel: the cast rides
    # idle VPU slots under the MXU and avoids wrapper-side HBM copies.
    x = x_ref[...].astype(mxu_dtype)
    h = jnp.dot(x, w1_ref[...].astype(mxu_dtype),
                preferred_element_type=jnp.float32)
    h = jnp.maximum(h + b1_ref[...], 0.0)

    acc_ref[...] += jnp.dot(
        h.astype(mxu_dtype), w2_ref[...].astype(mxu_dtype),
        preferred_element_type=jnp.float32).astype(acc_ref.dtype)

    if not acc_into_out:
        @pl.when(k == pl.num_programs(1) - 1)
        def _finalize():
            o_ref[...] = acc_ref[...].astype(o_ref.dtype)


@functools.partial(
    jax.jit, static_argnames=("use_bf16", "max_tf", "single_buffer_weights"))
def _ffn_call(x, w1, b1, w2, b2, *, use_bf16, max_tf, single_buffer_weights):
    orig_dtype = x.dtype
    *lead, d_model = x.shape
    d_ff = w1.shape[1]
    M = math.prod(lead) if lead else 1

    mxu_dtype = jnp.bfloat16 if use_bf16 else orig_dtype
    x_bytes = jnp.dtype(x.dtype).itemsize
    w_bytes = jnp.dtype(w1.dtype).itemsize
    out_bytes = jnp.dtype(orig_dtype).itemsize

    vmem_budget = _vmem_budget_bytes()
    tm, tf, resident = _plan_tiles(
        M, d_model, d_ff, x_bytes, w_bytes, out_bytes, vmem_budget,
        single_buffer_weights, max_tf if max_tf is not None else (1 << 30))

    M_pad = _round_up(M, tm)
    d_ff_pad = _round_up(d_ff, tf)
    grid = (M_pad // tm, d_ff_pad // tf)

    # No dtype casts here: x / W1 / W2 go to the kernel as-is and are cast to
    # bf16 on-chip.  Only zero-padding (exact: relu(0) = 0, padded rows are
    # sliced off) when shapes don't divide the tiles; biases are tiny -> f32.
    x2d = x.reshape(M, d_model)
    if M_pad != M:
        x2d = jnp.pad(x2d, ((0, M_pad - M), (0, 0)))
    w1p, w2p = w1, w2
    b1f = b1.astype(jnp.float32).reshape(1, d_ff)
    b2f = b2.astype(jnp.float32).reshape(1, d_model)
    if d_ff_pad != d_ff:
        w1p = jnp.pad(w1p, ((0, 0), (0, d_ff_pad - d_ff)))
        b1f = jnp.pad(b1f, ((0, 0), (0, d_ff_pad - d_ff)))
        w2p = jnp.pad(w2p, ((0, d_ff_pad - d_ff), (0, 0)))

    # For f32 outputs accumulate directly into the (resident) output block.
    acc_into_out = orig_dtype == jnp.float32
    scratch_shapes = [] if acc_into_out else [
        pltpu.VMEM((tm, d_model), jnp.float32)]

    def _w_spec(shape, index_map):
        if resident and single_buffer_weights:
            # Weight block index never changes -> a single VMEM buffer is
            # enough; halves resident weight VMEM (matters on v7x's 64 MiB).
            return pl.BlockSpec(shape, index_map,
                                pipeline_mode=pl.Buffered(1))
        return pl.BlockSpec(shape, index_map)

    kernel = functools.partial(_ffn_kernel, mxu_dtype=mxu_dtype,
                               acc_into_out=acc_into_out)

    cost = pl.CostEstimate(
        flops=4 * M_pad * d_model * d_ff_pad,
        transcendentals=0,
        bytes_accessed=int(
            M_pad * d_model * (x_bytes + out_bytes)
            + (1 if resident else grid[0]) * 2 * d_model * d_ff_pad * w_bytes
            + d_ff_pad * 4 + d_model * 4),
    )

    out2d = pl.pallas_call(
        kernel,
        out_shape=jax.ShapeDtypeStruct((M_pad, d_model), orig_dtype),
        grid_spec=pltpu.PrefetchScalarGridSpec(
            num_scalar_prefetch=0,
            grid=grid,
            in_specs=[
                pl.BlockSpec((tm, d_model), lambda i, k: (i, 0)),   # x rows
                _w_spec((d_model, tf), lambda i, k: (0, k)),        # W1 slice
                _w_spec((1, tf), lambda i, k: (0, k)),              # b1 slice
                _w_spec((tf, d_model), lambda i, k: (k, 0)),        # W2 slice
                _w_spec((1, d_model), lambda i, k: (0, 0)),         # b2
            ],
            out_specs=pl.BlockSpec((tm, d_model), lambda i, k: (i, 0)),
            scratch_shapes=scratch_shapes,
        ),
        compiler_params=pltpu.CompilerParams(
            dimension_semantics=("parallel", "arbitrary"),
            vmem_limit_bytes=int(vmem_budget),
        ),
        cost_estimate=cost,
    )(x2d, w1p, b1f, w2p, b2f)

    out = out2d[:M]
    return out.reshape(*lead, d_model)


def position_wise_feed_forward(x, w1, b1, w2, b2, *, use_bf16=True,
                               max_tf=None):
    """fc2(relu(fc1(x))) for x of shape (..., d_model).

    Weights are stored transposed relative to torch.nn.Linear:
      w1: (d_model, d_ff), b1: (d_ff,), w2: (d_ff, d_model), b2: (d_model,).
    Pass bf16 activations/weights to avoid any conversion traffic; f32 inputs
    are cast to bf16 on-chip.  use_bf16=False is a debug/accuracy path only.
    """
    try:
        return _ffn_call(x, w1, b1, w2, b2, use_bf16=use_bf16, max_tf=max_tf,
                         single_buffer_weights=True)
    except Exception:
        # pl.Buffered(1) single-buffering of resident weights not supported
        # by this JAX build — fall back to default double-buffered blocks.
        return _ffn_call(x, w1, b1, w2, b2, use_bf16=use_bf16, max_tf=max_tf,
                         single_buffer_weights=False)


def _reference(x, w1, b1, w2, b2):
    h = jnp.maximum(
        jnp.dot(x, w1, precision=jax.lax.Precision.HIGHEST) + b1, 0.0)
    return jnp.dot(h, w2, precision=jax.lax.Precision.HIGHEST) + b2


def _make_params(key, d_model, d_ff):
    k1, kb1, k2, kb2 = jax.random.split(key, 4)
    bound1 = 1.0 / (d_model ** 0.5)
    bound2 = 1.0 / (d_ff ** 0.5)
    w1 = jax.random.uniform(k1, (d_model, d_ff), jnp.float32, -bound1, bound1)
    b1 = jax.random.uniform(kb1, (d_ff,), jnp.float32, -bound1, bound1)
    w2 = jax.random.uniform(k2, (d_ff, d_model), jnp.float32, -bound2, bound2)
    b2 = jax.random.uniform(kb2, (d_model,), jnp.float32, -bound2, bound2)
    return w1, b1, w2, b2


if __name__ == "__main__":
    key = jax.random.PRNGKey(0)
    ka, kb, kc, kd = jax.random.split(key, 4)

    # ---- Case A: resident-weight path (single d_ff slice), f32 in/out. ----
    batch, seq, d_model, d_ff = 2, 8, 128, 256
    w1, b1, w2, b2 = _make_params(ka, d_model, d_ff)
    x = jax.random.normal(kb, (batch, seq, d_model), jnp.float32)
    ref = _reference(x, w1, b1, w2, b2)

    out_a = jax.block_until_ready(
        position_wise_feed_forward(x, w1, b1, w2, b2, use_bf16=True))
    assert out_a.shape == (batch, seq, d_model)
    assert jnp.allclose(out_a, ref, atol=3e-2, rtol=3e-2)

    out_a32 = jax.block_until_ready(     # debug f32 path
        position_wise_feed_forward(x, w1, b1, w2, b2, use_bf16=False))
    assert jnp.allclose(out_a32, ref, atol=1e-4, rtol=1e-4)

    # ---- Case B: forced d_ff slicing (grid_k > 1) + row padding, f32 out
    #      (accumulates directly into the resident output block). ----
    batch, seq, d_model, d_ff = 3, 10, 128, 384
    w1, b1, w2, b2 = _make_params(kc, d_model, d_ff)
    x = jax.random.normal(kd, (batch, seq, d_model), jnp.float32)
    ref = _reference(x, w1, b1, w2, b2)

    out_b = jax.block_until_ready(
        position_wise_feed_forward(x, w1, b1, w2, b2, use_bf16=False,
                                   max_tf=128))
    assert out_b.shape == (batch, seq, d_model)
    assert jnp.allclose(out_b, ref, atol=1e-4, rtol=1e-4)

    # ---- Case C: bf16 activations & weights end-to-end, multi-k slicing
    #      (exercises the f32 scratch-accumulator finalize path). ----
    out_c = jax.block_until_ready(
        position_wise_feed_forward(
            x.astype(jnp.bfloat16), w1.astype(jnp.bfloat16), b1,
            w2.astype(jnp.bfloat16), b2, use_bf16=True, max_tf=128))
    assert out_c.dtype == jnp.bfloat16
    assert jnp.allclose(out_c.astype(jnp.float32), ref, atol=6e-2, rtol=6e-2)

    print("KERNEL_OK")
</pallas_src>

<mosaic_0001>
module attributes {stable_mosaic.version = 11 : i64} {
  func.func @_ffn_kernel(%arg0: i32, %arg1: i32, %arg2: memref<16x128xf32, #tpu.memory_space<vmem>>, %arg3: memref<128x256xf32, #tpu.memory_space<vmem>>, %arg4: memref<1x256xf32, #tpu.memory_space<vmem>>, %arg5: memref<256x128xf32, #tpu.memory_space<vmem>>, %arg6: memref<1x128xf32, #tpu.memory_space<vmem>>, %arg7: memref<16x128xf32, #tpu.memory_space<vmem>>) attributes {dimension_semantics = [#tpu.dimension_semantics<parallel>, #tpu.dimension_semantics<arbitrary>], iteration_bounds = array<i64: 1, 1>, scalar_prefetch = 0 : i64, scratch_operands = 0 : i64, tpu.core_type = #tpu.core_type<tc>, window_params = [{transform_indices = @transform_0, window_bounds = array<i64: 16, 128>}, {pipeline_mode = #tpu.pipeline_mode<synchronous>, transform_indices = @transform_1, window_bounds = array<i64: 128, 256>}, {pipeline_mode = #tpu.pipeline_mode<synchronous>, transform_indices = @transform_2, window_bounds = array<i64: 1, 256>}, {pipeline_mode = #tpu.pipeline_mode<synchronous>, transform_indices = @transform_3, window_bounds = array<i64: 256, 128>}, {pipeline_mode = #tpu.pipeline_mode<synchronous>, transform_indices = @transform_4, window_bounds = array<i64: 1, 128>}, {transform_indices = @transform_5, window_bounds = array<i64: 16, 128>}]} {
    %c0_i32 = arith.constant 0 : i32
    %0 = arith.cmpi eq, %arg1, %c0_i32 : i32
    %1 = arith.extui %0 : i1 to i32
    %c0_i32_0 = arith.constant 0 : i32
    %2 = arith.cmpi ne, %1, %c0_i32_0 : i32
    scf.if %2 {
      %c0_14 = arith.constant 0 : index
      %c0_15 = arith.constant 0 : index
      %20 = vector.load %arg6[%c0_14, %c0_15] : memref<1x128xf32, #tpu.memory_space<vmem>>, vector<1x128xf32>
      %21 = vector.shape_cast %20 : vector<1x128xf32> to vector<1x128xf32>
      %22 = vector.broadcast %21 : vector<1x128xf32> to vector<16x128xf32>
      %c0_16 = arith.constant 0 : index
      %c0_17 = arith.constant 0 : index
      %23 = vector.load %arg7[%c0_16, %c0_17] : memref<16x128xf32, #tpu.memory_space<vmem>>, vector<16x128xf32>
      tpu.vector_store %arg7[%c0_16, %c0_17], %22 {strides = array<i32>} : memref<16x128xf32, #tpu.memory_space<vmem>>, vector<16x128xf32>,
    } else {
    }
    %c0 = arith.constant 0 : index
    %c0_1 = arith.constant 0 : index
    %3 = vector.load %arg2[%c0, %c0_1] : memref<16x128xf32, #tpu.memory_space<vmem>>, vector<16x128xf32>
    %4 = arith.truncf %3 : vector<16x128xf32> to vector<16x128xbf16>
    %c0_2 = arith.constant 0 : index
    %c0_3 = arith.constant 0 : index
    %5 = vector.load %arg3[%c0_2, %c0_3] : memref<128x256xf32, #tpu.memory_space<vmem>>, vector<128x256xf32>
    %6 = arith.truncf %5 : vector<128x256xf32> to vector<128x256xbf16>
    %cst = arith.constant dense<0.000000e+00> : vector<16x256xf32>
    %7 = tpu.matmul %4, %6, %cst {dimension_numbers = #tpu.dot_dimension_numbers<[1], [0], [0], [1], [0, 0, 1, 1], [], []>} : vector<16x128xbf16>, vector<128x256xbf16>, vector<16x256xf32> -> vector<16x256xf32>
    %c0_4 = arith.constant 0 : index
    %c0_5 = arith.constant 0 : index
    %8 = vector.load %arg4[%c0_4, %c0_5] : memref<1x256xf32, #tpu.memory_space<vmem>>, vector<1x256xf32>
    %9 = vector.broadcast %8 : vector<1x256xf32> to vector<16x256xf32>
    %10 = arith.addf %7, %9 : vector<16x256xf32>
    %cst_6 = arith.constant 0.000000e+00 : f32
    %11 = vector.broadcast %cst_6 : f32 to vector<16x256xf32>
    %12 = arith.maximumf %10, %11 : vector<16x256xf32>
    %c0_7 = arith.constant 0 : index
    %c0_8 = arith.constant 0 : index
    %13 = vector.load %arg7[%c0_7, %c0_8] : memref<16x128xf32, #tpu.memory_space<vmem>>, vector<16x128xf32>
    %14 = arith.truncf %12 : vector<16x256xf32> to vector<16x256xbf16>
    %c0_9 = arith.constant 0 : index
    %c0_10 = arith.constant 0 : index
    %15 = vector.load %arg5[%c0_9, %c0_10] : memref<256x128xf32, #tpu.memory_space<vmem>>, vector<256x128xf32>
    %16 = arith.truncf %15 : vector<256x128xf32> to vector<256x128xbf16>
    %cst_11 = arith.constant dense<0.000000e+00> : vector<16x128xf32>
    %17 = tpu.matmul %14, %16, %cst_11 {dimension_numbers = #tpu.dot_dimension_numbers<[1], [0], [0], [1], [0, 0, 1, 1], [], []>} : vector<16x256xbf16>, vector<256x128xbf16>, vector<16x128xf32> -> vector<16x128xf32>
    %18 = arith.addf %13, %17 : vector<16x128xf32>
    %c0_12 = arith.constant 0 : index
    %c0_13 = arith.constant 0 : index
    %19 = vector.load %arg7[%c0_12, %c0_13] : memref<16x128xf32, #tpu.memory_space<vmem>>, vector<16x128xf32>
    tpu.vector_store %arg7[%c0_12, %c0_13], %18 {strides = array<i32>} : memref<16x128xf32, #tpu.memory_space<vmem>>, vector<16x128xf32>,
    return
  }
  func.func @transform_0(%arg0: i32, %arg1: i32) -> (i32, i32) {
    %c0_i32 = arith.constant 0 : i32
    %c0_i32_0 = arith.constant 0 : i32
    return %arg0, %c0_i32 : i32, i32
  }
  func.func @transform_1(%arg0: i32, %arg1: i32) -> (i32, i32) {
    %c0_i32 = arith.constant 0 : i32
    %c0_i32_0 = arith.constant 0 : i32
    return %c0_i32, %arg1 : i32, i32
  }
  func.func @transform_2(%arg0: i32, %arg1: i32) -> (i32, i32) {
    %c0_i32 = arith.constant 0 : i32
    %c0_i32_0 = arith.constant 0 : i32
    return %c0_i32, %arg1 : i32, i32
  }
  func.func @transform_3(%arg0: i32, %arg1: i32) -> (i32, i32) {
    %c0_i32 = arith.constant 0 : i32
    %c0_i32_0 = arith.constant 0 : i32
    return %arg1, %c0_i32 : i32, i32
  }
  func.func @transform_4(%arg0: i32, %arg1: i32) -> (i32, i32) {
    %c0_i32 = arith.constant 0 : i32
    %c0_i32_0 = arith.constant 0 : i32
    %c0_i32_1 = arith.constant 0 : i32
    return %c0_i32, %c0_i32_0 : i32, i32
  }
  func.func @transform_5(%arg0: i32, %arg1: i32) -> (i32, i32) {
    %c0_i32 = arith.constant 0 : i32
    %c0_i32_0 = arith.constant 0 : i32
    return %arg0, %c0_i32 : i32, i32
  }
}

module attributes {stable_mosaic.version = 11 : i64} {
  func.func @_ffn_kernel(%arg0: i32, %arg1: i32, %arg2: memref<16x128xf32, #tpu.memory_space<vmem>>, %arg3: memref<128x256xf32, #tpu.memory_space<vmem>>, %arg4: memref<1x256xf32, #tpu.memory_space<vmem>>, %arg5: memref<256x128xf32, #tpu.memory_space<vmem>>, %arg6: memref<1x128xf32, #tpu.memory_space<vmem>>, %arg7: memref<16x128xf32, #tpu.memory_space<vmem>>) attributes {dimension_semantics = [#tpu.dimension_semantics<parallel>, #tpu.dimension_semantics<arbitrary>], iteration_bounds = array<i64: 1, 1>, scalar_prefetch = 0 : i64, scratch_operands = 0 : i64, tpu.core_type = #tpu.core_type<tc>, window_params = [{transform_indices = @transform_0, window_bounds = array<i64: 16, 128>}, {transform_indices = @transform_1, window_bounds = array<i64: 128, 256>}, {transform_indices = @transform_2, window_bounds = array<i64: 1, 256>}, {transform_indices = @transform_3, window_bounds = array<i64: 256, 128>}, {pipeline_mode = #tpu.pipeline_mode<synchronous>, transform_indices = @transform_4, window_bounds = array<i64: 1, 128>}, {transform_indices = @transform_5, window_bounds = array<i64: 16, 128>}]} {
    %c0_i32 = arith.constant 0 : i32
    %0 = arith.cmpi eq, %arg1, %c0_i32 : i32
    %1 = arith.extui %0 : i1 to i32
    %c0_i32_0 = arith.constant 0 : i32
    %2 = arith.cmpi ne, %1, %c0_i32_0 : i32
    scf.if %2 {
      %c0_14 = arith.constant 0 : index
      %c0_15 = arith.constant 0 : index
      %20 = vector.load %arg6[%c0_14, %c0_15] : memref<1x128xf32, #tpu.memory_space<vmem>>, vector<1x128xf32>
      %21 = vector.shape_cast %20 : vector<1x128xf32> to vector<1x128xf32>
      %22 = vector.broadcast %21 : vector<1x128xf32> to vector<16x128xf32>
      %c0_16 = arith.constant 0 : index
      %c0_17 = arith.constant 0 : index
      %23 = vector.load %arg7[%c0_16, %c0_17] : memref<16x128xf32, #tpu.memory_space<vmem>>, vector<16x128xf32>
      tpu.vector_store %arg7[%c0_16, %c0_17], %22 {strides = array<i32>} : memref<16x128xf32, #tpu.memory_space<vmem>>, vector<16x128xf32>,
    } else {
    }
    %c0 = arith.constant 0 : index
    %c0_1 = arith.constant 0 : index
    %3 = vector.load %arg2[%c0, %c0_1] : memref<16x128xf32, #tpu.memory_space<vmem>>, vector<16x128xf32>
    %4 = arith.truncf %3 : vector<16x128xf32> to vector<16x128xbf16>
    %c0_2 = arith.constant 0 : index
    %c0_3 = arith.constant 0 : index
    %5 = vector.load %arg3[%c0_2, %c0_3] : memref<128x256xf32, #tpu.memory_space<vmem>>, vector<128x256xf32>
    %6 = arith.truncf %5 : vector<128x256xf32> to vector<128x256xbf16>
    %cst = arith.constant dense<0.000000e+00> : vector<16x256xf32>
    %7 = tpu.matmul %4, %6, %cst {dimension_numbers = #tpu.dot_dimension_numbers<[1], [0], [0], [1], [0, 0, 1, 1], [], []>} : vector<16x128xbf16>, vector<128x256xbf16>, vector<16x256xf32> -> vector<16x256xf32>
    %c0_4 = arith.constant 0 : index
    %c0_5 = arith.constant 0 : index
    %8 = vector.load %arg4[%c0_4, %c0_5] : memref<1x256xf32, #tpu.memory_space<vmem>>, vector<1x256xf32>
    %9 = vector.broadcast %8 : vector<1x256xf32> to vector<16x256xf32>
    %10 = arith.addf %7, %9 : vector<16x256xf32>
    %cst_6 = arith.constant 0.000000e+00 : f32
    %11 = vector.broadcast %cst_6 : f32 to vector<16x256xf32>
    %12 = arith.maximumf %10, %11 : vector<16x256xf32>
    %c0_7 = arith.constant 0 : index
    %c0_8 = arith.constant 0 : index
    %13 = vector.load %arg7[%c0_7, %c0_8] : memref<16x128xf32, #tpu.memory_space<vmem>>, vector<16x128xf32>
    %14 = arith.truncf %12 : vector<16x256xf32> to vector<16x256xbf16>
    %c0_9 = arith.constant 0 : index
    %c0_10 = arith.constant 0 : index
    %15 = vector.load %arg5[%c0_9, %c0_10] : memref<256x128xf32, #tpu.memory_space<vmem>>, vector<256x128xf32>
    %16 = arith.truncf %15 : vector<256x128xf32> to vector<256x128xbf16>
    %cst_11 = arith.constant dense<0.000000e+00> : vector<16x128xf32>
    %17 = tpu.matmul %14, %16, %cst_11 {dimension_numbers = #tpu.dot_dimension_numbers<[1], [0], [0], [1], [0, 0, 1, 1], [], []>} : vector<16x256xbf16>, vector<256x128xbf16>, vector<16x128xf32> -> vector<16x128xf32>
    %18 = arith.addf %13, %17 : vector<16x128xf32>
    %c0_12 = arith.constant 0 : index
    %c0_13 = arith.constant 0 : index
    %19 = vector.load %arg7[%c0_12, %c0_13] : memref<16x128xf32, #tpu.memory_space<vmem>>, vector<16x128xf32>
    tpu.vector_store %arg7[%c0_12, %c0_13], %18 {strides = array<i32>} : memref<16x128xf32, #tpu.memory_space<vmem>>, vector<16x128xf32>,
    return
  }
  func.func @transform_0(%arg0: i32, %arg1: i32) -> (i32, i32) {
    %c0_i32 = arith.constant 0 : i32
    %c0_i32_0 = arith.constant 0 : i32
    return %arg0, %c0_i32 : i32, i32
  }
  func.func @transform_1(%arg0: i32, %arg1: i32) -> (i32, i32) {
    %c0_i32 = arith.constant 0 : i32
    %c0_i32_0 = arith.constant 0 : i32
    return %c0_i32, %arg1 : i32, i32
  }
  func.func @transform_2(%arg0: i32, %arg1: i32) -> (i32, i32) {
    %c0_i32 = arith.constant 0 : i32
    %c0_i32_0 = arith.constant 0 : i32
    return %c0_i32, %arg1 : i32, i32
  }
  func.func @transform_3(%arg0: i32, %arg1: i32) -> (i32, i32) {
    %c0_i32 = arith.constant 0 : i32
    %c0_i32_0 = arith.constant 0 : i32
    return %arg1, %c0_i32 : i32, i32
  }
  func.func @transform_4(%arg0: i32, %arg1: i32) -> (i32, i32) {
    %c0_i32 = arith.constant 0 : i32
    %c0_i32_0 = arith.constant 0 : i32
    %c0_i32_1 = arith.constant 0 : i32
    return %c0_i32, %c0_i32_0 : i32, i32
  }
  func.func @transform_5(%arg0: i32, %arg1: i32) -> (i32, i32) {
    %c0_i32 = arith.constant 0 : i32
    %c0_i32_0 = arith.constant 0 : i32
    return %arg0, %c0_i32 : i32, i32
  }
}

</mosaic_0001>

<llo_original>
// kernel: _ffn_call.1
$region0: #{_ffn_call.1}
  #allocation0 [shape = 'u32[]', space=smem, size = 0x4, offset = 0x4, fixed_abs, tag = 'smem constant byte address 0x4 - core index']
  #allocation1 [shape = 'u32[144,128]{1,0:T(1,128)}', space=vmem, size = 0x12000, scoped, tag = 'internal scratch']
  %s0 = inlined_call_operand.hbm [shape: f32[16,128], index: 0, kind: input, shape index: {}]
  %s1 = inlined_call_operand.hbm [shape: f32[128,256], index: 1, kind: input, shape index: {}]
  %s2 = inlined_call_operand.vmem [shape: f32[1,256], index: 2, kind: input, shape index: {}]
  %s3 = inlined_call_operand.hbm [shape: f32[256,128], index: 3, kind: input, shape index: {}]
  %s4 = inlined_call_operand.vmem [shape: f32[1,128], index: 4, kind: input, shape index: {}]
  %s5 = inlined_call_operand.hbm [shape: f32[16,128], index: 5, kind: output, shape index: {}]
  %s6 = sld [smem:[#allocation0]]
  $region46: #{_ffn_call.1} parent=0
    _
  %s8 = ssub.s32 1, %s6
  %s9 = scalar_select 0, %s8, %s6
  $region1: #{_ffn_call.1} parent=0
    #allocation2 [shape = 'u8[8192]{0}', space=vmem, size = 0x2000, scoped, tag = 'input window, operand 0, single buffered']
    #allocation3 [shape = 's32[1]{0}', space=sflag, size = 0x4, scoped, tag = 'scoped memory for _ffn_call.1']
    #allocation4 [shape = 's32[1]{0}', space=sflag, size = 0x4, scoped, tag = 'scoped memory for _ffn_call.1']
    #allocation5 [shape = 'u8[131072]{0}', space=vmem, size = 0x20000, scoped, tag = 'input window, operand 1, single buffered']
    #allocation6 [shape = 's32[1]{0}', space=sflag, size = 0x4, scoped, tag = 'scoped memory for _ffn_call.1']
    #allocation7 [shape = 'u8[131072]{0}', space=vmem, size = 0x20000, scoped, tag = 'input window, operand 3, single buffered']
    #allocation8 [shape = 'u8[8192]{0}', space=vmem, size = 0x2000, scoped, tag = 'output window, operand 0, single buffered']
    %10 = vsyncpa [#allocation3], 0
    %11 = vsyncpa [#allocation6], 0
    %12 = vsyncpa [#allocation4], 0
    // Predicated region
    $region2: #{_ffn_call.1} parent=1 // pred_check
      _
    $region3: #{_ffn_call.1} parent=1 // pred_check_branch
      %14 = sbr.rel (0) target = $region5
    $region4: #{_ffn_call.1} parent=1 // pred_region
      %s16 = ssub.s32 256, 256
      %17 = vsyncadd [#allocation3], %s16
      %s18 = sshll.u32 [#allocation2], 4
      %s19 = int_to_ptr.vmem [resolvable:$true] %s18
      %24 = dma.hbm_to_vmem [thread:$0]  %s0, 256, %s19, [#allocation3], 128, 128, 8
    $region5: #{_ffn_call.1} parent=1 // pred_fallthru
      _
    // Predicated region
    $region6: #{_ffn_call.1} parent=1 // pred_check
      _
    $region7: #{_ffn_call.1} parent=1 // pred_check_branch
      %26 = sbr.rel (0) target = $region9
    $region8: #{_ffn_call.1} parent=1 // pred_region
      %s28 = ssub.s32 4096, 4096
      %29 = vsyncadd [#allocation6], %s28
      %s30 = sshll.u32 [#allocation5], 4
      %s31 = int_to_ptr.vmem [resolvable:$true] %s30
      %36 = dma.hbm_to_vmem [thread:$0]  %s1, 4096, %s31, [#allocation6], 256, 256, 16
    $region9: #{_ffn_call.1} parent=1 // pred_fallthru
      _
    // Predicated region
    $region10: #{_ffn_call.1} parent=1 // pred_check
      _
    $region11: #{_ffn_call.1} parent=1 // pred_check_branch
      %38 = sbr.rel (0) target = $region13
    $region12: #{_ffn_call.1} parent=1 // pred_region
      _
    $region13: #{_ffn_call.1} parent=1 // pred_fallthru
      _
    // Predicated region
    $region14: #{_ffn_call.1} parent=1 // pred_check
      _
    $region15: #{_ffn_call.1} parent=1 // pred_check_branch
      %40 = sbr.rel (0) target = $region17
    $region16: #{_ffn_call.1} parent=1 // pred_region
      %s42 = ssub.s32 4096, 4096
      %43 = vsyncadd [#allocation6], %s42
      %s44 = sshll.u32 [#allocation7], 4
      %s45 = int_to_ptr.vmem [resolvable:$true] %s44
      %50 = dma.hbm_to_vmem [thread:$0]  %s3, 4096, %s45, [#allocation6], 128, 128, 8
    $region17: #{_ffn_call.1} parent=1 // pred_fallthru
      _
    // Predicated region
    $region18: #{_ffn_call.1} parent=1 // pred_check
      _
    $region19: #{_ffn_call.1} parent=1 // pred_check_branch
      %52 = sbr.rel (0) target = $region21
    $region20: #{_ffn_call.1} parent=1 // pred_region
      _
    $region21: #{_ffn_call.1} parent=1 // pred_fallthru
      _
    // Predicated region
    $region22: #{_ffn_call.1} parent=1 // pred_check
      _
    $region23: #{_ffn_call.1} parent=1 // pred_check_branch
      %54 = sbr.rel (0) target = $region25
    $region24: #{_ffn_call.1} parent=1 // pred_region
      %55 = dma.done [#allocation3], 256
    $region25: #{_ffn_call.1} parent=1 // pred_fallthru
      _
    // Predicated region
    $region26: #{_ffn_call.1} parent=1 // pred_check
      _
    $region27: #{_ffn_call.1} parent=1 // pred_check_branch
      %57 = sbr.rel (0) target = $region29
    $region28: #{_ffn_call.1} parent=1 // pred_region
      %58 = dma.done [#allocation6], 4096
    $region29: #{_ffn_call.1} parent=1 // pred_fallthru
      _
    // Predicated region
    $region30: #{_ffn_call.1} parent=1 // pred_check
      _
    $region31: #{_ffn_call.1} parent=1 // pred_check_branch
      %60 = sbr.rel (0) target = $region33
    $region32: #{_ffn_call.1} parent=1 // pred_region
      %61 = dma.done [#allocation6], 4096
    $region33: #{_ffn_call.1} parent=1 // pred_fallthru
      _
    %p63 = scmp.eq.s32.totalorder 0, 0
    // Predicated region
    $region34: #{_ffn_call.1} parent=1 // pred_check
      %p64 = pneg %p63
    $region35: #{_ffn_call.1} parent=1 // pred_check_branch
      %66 = sbr.rel (%p64) target = $region37
    $region36: #{_ffn_call.1} parent=1 // pred_region
      %v67 = vld [vmem:[%s4] sm:$0x1]
      %v69 = vlaneseq
      %v70 = vshrl.u32 %v69, 7
      %v71 = vsub.s32 0, %v70
      %v72 = vrot.slane %v67, %v71
      %74 = vst [vmem:[#allocation8] sm:$0xff] %v72
      %75 = vst [vmem:[#allocation8 + $0x8] sm:$0xff] %v72
    $region37: #{_ffn_call.1} parent=1 // pred_fallthru
      _
    %v76 = vld [vmem:[#allocation2] sm:$0xff]
    %v77 = vld [vmem:[#allocation2 + $0x8] sm:$0xff]
    %v78 = vpack.c.bf16 %v77, %v76
    %v79 = vld [vmem:[#allocation5] sm:$0xff]
    %v80 = vld [vmem:[#allocation5 + $0x8] sm:$0xff]
    %v81 = vld [vmem:[#allocation5 + $0x10] sm:$0xff]
    %v82 = vld [vmem:[#allocation5 + $0x18] sm:$0xff]
    %v83 = vld [vmem:[#allocation5 + $0x20] sm:$0xff]
    %v84 = vld [vmem:[#allocation5 + $0x28] sm:$0xff]
    %v85 = vld [vmem:[#allocation5 + $0x30] sm:$0xff]
    %v86 = vld [vmem:[#allocation5 + $0x38] sm:$0xff]
    %v87 = vld [vmem:[#allocation5 + $0x40] sm:$0xff]
    %v88 = vld [vmem:[#allocation5 + $0x48] sm:$0xff]
    %v89 = vld [vmem:[#allocation5 + $0x50] sm:$0xff]
    %v90 = vld [vmem:[#allocation5 + $0x58] sm:$0xff]
    %v91 = vld [vmem:[#allocation5 + $0x60] sm:$0xff]
    %v92 = vld [vmem:[#allocation5 + $0x68] sm:$0xff]
    %v93 = vld [vmem:[#allocation5 + $0x70] sm:$0xff]
    %v94 = vld [vmem:[#allocation5 + $0x78] sm:$0xff]
    %v95 = vld [vmem:[#allocation5 + $0x80] sm:$0xff]
    %v96 = vld [vmem:[#allocation5 + $0x88] sm:$0xff]
    %v97 = vld [vmem:[#allocation5 + $0x90] sm:$0xff]
    %v98 = vld [vmem:[#allocation5 + $0x98] sm:$0xff]
    %v99 = vld [vmem:[#allocation5 + $0xa0] sm:$0xff]
    %v100 = vld [vmem:[#allocation5 + $0xa8] sm:$0xff]
    %v101 = vld [vmem:[#allocation5 + $0xb0] sm:$0xff]
    %v102 = vld [vmem:[#allocation5 + $0xb8] sm:$0xff]
    %v103 = vld [vmem:[#allocation5 + $0xc0] sm:$0xff]
    %v104 = vld [vmem:[#allocation5 + $0xc8] sm:$0xff]
    %v105 = vld [vmem:[#allocation5 + $0xd0] sm:$0xff]
    %v106 = vld [vmem:[#allocation5 + $0xd8] sm:$0xff]
    %v107 = vld [vmem:[#allocation5 + $0xe0] sm:$0xff]
    %v108 = vld [vmem:[#allocation5 + $0xe8] sm:$0xff]
    %v109 = vld [vmem:[#allocation5 + $0xf0] sm:$0xff]
    %v110 = vld [vmem:[#allocation5 + $0xf8] sm:$0xff]
    %v111 = vpack.c.bf16 %v81, %v79
    %v112 = vpack.c.bf16 %v82, %v80
    %v113 = vpack.c.bf16 %v85, %v83
    %v114 = vpack.c.bf16 %v86, %v84
    %v115 = vpack.c.bf16 %v89, %v87
    %v116 = vpack.c.bf16 %v90, %v88
    %v117 = vpack.c.bf16 %v93, %v91
    %v118 = vpack.c.bf16 %v94, %v92
    %v119 = vpack.c.bf16 %v97, %v95
    %v120 = vpack.c.bf16 %v98, %v96
    %v121 = vpack.c.bf16 %v101, %v99
    %v122 = vpack.c.bf16 %v102, %v100
    %v123 = vpack.c.bf16 %v105, %v103
    %v124 = vpack.c.bf16 %v106, %v104
    %v125 = vpack.c.bf16 %v109, %v107
    %v126 = vpack.c.bf16 %v110, %v108
    %v127 = vld [vmem:[%s2] sm:$0x3]
    %v129 = vlaneseq
    %v130 = vshrl.u32 %v129, 7
    %v131 = vsub.s32 0, %v130
    %v132 = vrot.slane %v127, %v131
    %v133 = vlaneseq
    %v134 = vshrl.u32 %v133, 7
    %v135 = vsub.s32 1, %v134
    %v136 = vrot.slane %v127, %v135
    %139 = vmatprep.subr.bf16.mxu0 %v126
    %140 = vmatpush1.bf16.msra.mxu0 %v125
    %141 = vmatprep.subr.bf16.mxu0 %v124
    %142 = vmatpush1.bf16.msra.mxu0 %v123
    %143 = vmatprep.subr.bf16.mxu0 %v122
    %144 = vmatpush1.bf16.msra.mxu0 %v121
    %145 = vmatprep.subr.bf16.mxu0 %v120
    %146 = vmatpush1.bf16.msra.mxu0 %v119
    %147 = vmatprep.subr.bf16.mxu0 %v118
    %148 = vmatpush1.bf16.msra.mxu0 %v117
    %149 = vmatprep.subr.bf16.mxu0 %v116
    %150 = vmatpush1.bf16.msra.mxu0 %v115
    %151 = vmatprep.subr.bf16.mxu0 %v114
    %152 = vmatpush1.bf16.msra.mxu0 %v113
    %153 = vmatprep.subr.bf16.mxu0 %v112
    %154 = vmatpush1.bf16.msra.mxu0 %v111
    %155 = vmatprep.subr.bf16.mxu0 0
    %156 = vmatpush2.bf16.msra.mxu0 0
    %157 = vmatprep.subr.bf16.mxu0 0
    %158 = vmatpush2.bf16.msra.mxu0 0
    %159 = vmatprep.subr.bf16.mxu0 0
    %160 = vmatpush2.bf16.msra.mxu0 0
    %161 = vmatprep.subr.bf16.mxu0 0
    %162 = vmatpush2.bf16.msra.mxu0 0
    %163 = vmatprep.subr.bf16.mxu0 0
    %164 = vmatpush2.bf16.msra.mxu0 0
    %165 = vmatprep.subr.bf16.mxu0 0
    %166 = vmatpush2.bf16.msra.mxu0 0
    %167 = vmatprep.subr.bf16.mxu0 0
    %168 = vmatpush2.bf16.msra.mxu0 0
    %169 = vmatprep.subr.bf16.mxu0 0
    %170 = vmatpush2.bf16.msra.mxu0 0
    %171 = vmatprep.mubr.bf16.mxu0 0
    %172 = vmatmul.mubr.bf16.gmra.mxu0 %v78
    %v173 = vpop.f32.mrf.mxu0
    %v174 = vadd.f32 %v132, %v173
    %v175 = vpop.f32.mrf.mxu0
    %v176 = vadd.f32 %v136, %v175
    %v177 = vpop.f32.mrf.mxu0
    %v178 = vadd.f32 %v132, %v177
    %v179 = vpop.f32.mrf.mxu0
    %v180 = vadd.f32 %v136, %v179
    %181 = vdwg.mxu0
    %v182 = vmax.f32 %v174, 0.0
    %v183 = vmax.f32 %v176, 0.0
    %v184 = vmax.f32 %v178, 0.0
    %v185 = vmax.f32 %v180, 0.0
    %v186 = vld [vmem:[#allocation8] sm:$0xff]
    %v187 = vld [vmem:[#allocation8 + $0x8] sm:$0xff]
    %v188 = vpack.c.bf16 %v184, %v182
    %v189 = vpack.c.bf16 %v185, %v183
    %v190 = vld [vmem:[#allocation7] sm:$0xff]
    %v191 = vld [vmem:[#allocation7 + $0x8] sm:$0xff]
    %v192 = vld [vmem:[#allocation7 + $0x10] sm:$0xff]
    %v193 = vld [vmem:[#allocation7 + $0x18] sm:$0xff]
    %v194 = vld [vmem:[#allocation7 + $0x20] sm:$0xff]
    %v195 = vld [vmem:[#allocation7 + $0x28] sm:$0xff]
    %v196 = vld [vmem:[#allocation7 + $0x30] sm:$0xff]
    %v197 = vld [vmem:[#allocation7 + $0x38] sm:$0xff]
    %v198 = vld [vmem:[#allocation7 + $0x40] sm:$0xff]
    %v199 = vld [vmem:[#allocation7 + $0x48] sm:$0xff]
    %v200 = vld [vmem:[#allocation7 + $0x50] sm:$0xff]
    %v201 = vld [vmem:[#allocation7 + $0x58] sm:$0xff]
    %v202 = vld [vmem:[#allocation7 + $0x60] sm:$0xff]
    %v203 = vld [vmem:[#allocation7 + $0x68] sm:$0xff]
    %v204 = vld [vmem:[#allocation7 + $0x70] sm:$0xff]
    %v205 = vld [vmem:[#allocation7 + $0x78] sm:$0xff]
    %v206 = vld [vmem:[#allocation7 + $0x80] sm:$0xff]
    %v207 = vld [vmem:[#allocation7 + $0x88] sm:$0xff]
    %v208 = vld [vmem:[#allocation7 + $0x90] sm:$0xff]
    %v209 = vld [vmem:[#allocation7 + $0x98] sm:$0xff]
    %v210 = vld [vmem:[#allocation7 + $0xa0] sm:$0xff]
    %v211 = vld [vmem:[#allocation7 + $0xa8] sm:$0xff]
    %v212 = vld [vmem:[#allocation7 + $0xb0] sm:$0xff]
    %v213 = vld [vmem:[#allocation7 + $0xb8] sm:$0xff]
    %v214 = vld [vmem:[#allocation7 + $0xc0] sm:$0xff]
    %v215 = vld [vmem:[#allocation7 + $0xc8] sm:$0xff]
    %v216 = vld [vmem:[#allocation7 + $0xd0] sm:$0xff]
    %v217 = vld [vmem:[#allocation7 + $0xd8] sm:$0xff]
    %v218 = vld [vmem:[#allocation7 + $0xe0] sm:$0xff]
    %v219 = vld [vmem:[#allocation7 + $0xe8] sm:$0xff]
    %v220 = vld [vmem:[#allocation7 + $0xf0] sm:$0xff]
    %v221 = vld [vmem:[#allocation7 + $0xf8] sm:$0xff]
    %v222 = vpack.c.bf16 %v191, %v190
    %v223 = vpack.c.bf16 %v193, %v192
    %v224 = vpack.c.bf16 %v195, %v194
    %v225 = vpack.c.bf16 %v197, %v196
    %v226 = vpack.c.bf16 %v199, %v198
    %v227 = vpack.c.bf16 %v201, %v200
    %v228 = vpack.c.bf16 %v203, %v202
    %v229 = vpack.c.bf16 %v205, %v204
    %v230 = vpack.c.bf16 %v207, %v206
    %v231 = vpack.c.bf16 %v209, %v208
    %v232 = vpack.c.bf16 %v211, %v210
    %v233 = vpack.c.bf16 %v213, %v212
    %v234 = vpack.c.bf16 %v215, %v214
    %v235 = vpack.c.bf16 %v217, %v216
    %v236 = vpack.c.bf16 %v219, %v218
    %v237 = vpack.c.bf16 %v221, %v220
    %238 = vmatprep.subr.bf16.mxu0 0
    %239 = vmatpush1.bf16.msra.mxu0 %v229
    %240 = vmatprep.subr.bf16.mxu0 0
    %241 = vmatpush1.bf16.msra.mxu0 %v228
    %242 = vmatprep.subr.bf16.mxu0 0
    %243 = vmatpush1.bf16.msra.mxu0 %v227
    %244 = vmatprep.subr.bf16.mxu0 0
    %245 = vmatpush1.bf16.msra.mxu0 %v226
    %246 = vmatprep.subr.bf16.mxu0 0
    %247 = vmatpush1.bf16.msra.mxu0 %v225
    %248 = vmatprep.subr.bf16.mxu0 0
    %249 = vmatpush1.bf16.msra.mxu0 %v224
    %250 = vmatprep.subr.bf16.mxu0 0
    %251 = vmatpush1.bf16.msra.mxu0 %v223
    %252 = vmatprep.subr.bf16.mxu0 0
    %253 = vmatpush1.bf16.msra.mxu0 %v222
    %254 = vmatprep.subr.bf16.mxu0 0
    %255 = vmatpush2.bf16.msra.mxu0 %v237
    %256 = vmatprep.subr.bf16.mxu0 0
    %257 = vmatpush2.bf16.msra.mxu0 %v236
    %258 = vmatprep.subr.bf16.mxu0 0
    %259 = vmatpush2.bf16.msra.mxu0 %v235
    %260 = vmatprep.subr.bf16.mxu0 0
    %261 = vmatpush2.bf16.msra.mxu0 %v234
    %262 = vmatprep.subr.bf16.mxu0 0
    %263 = vmatpush2.bf16.msra.mxu0 %v233
    %264 = vmatprep.subr.bf16.mxu0 0
    %265 = vmatpush2.bf16.msra.mxu0 %v232
    %266 = vmatprep.subr.bf16.mxu0 0
    %267 = vmatpush2.bf16.msra.mxu0 %v231
    %268 = vmatprep.subr.bf16.mxu0 0
    %269 = vmatpush2.bf16.msra.mxu0 %v230
    %270 = vmatprep.mubr.bf16.mxu0 %v189
    %271 = vmatmul.mubr.bf16.gmra.mxu0 %v188
    %v272 = vpop.f32.mrf.mxu0
    %v273 = vadd.f32 0.0, %v272
    %v274 = vpop.f32.mrf.mxu0
    %v275 = vpop.f32.mrf.mxu0
    %v276 = vadd.f32 0.0, %v275
    %v277 = vpop.f32.mrf.mxu0
    %278 = vdwg.mxu0
    %v279 = vadd.f32 %v186, %v273
    %v280 = vadd.f32 %v187, %v276
    %281 = vst [vmem:[#allocation8] sm:$0xff] %v279
    %282 = vst [vmem:[#allocation8 + $0x8] sm:$0xff] %v280
    // Predicated region
    $region38: #{_ffn_call.1} parent=1 // pred_check
      _
    $region39: #{_ffn_call.1} parent=1 // pred_check_branch
      %284 = sbr.rel (0) target = $region41
    $region40: #{_ffn_call.1} parent=1 // pred_region
      %s286 = ssub.s32 256, 256
      %287 = vsyncadd [#allocation4], %s286
      %s288 = sshll.u32 [#allocation8], 4
      %s289 = int_to_ptr.vmem [resolvable:$true] %s288
      %294 = dma.vmem_to_hbm [thread:$0]  %s289, 256, %s5, [#allocation4], 128, 128, 8
    $region41: #{_ffn_call.1} parent=1 // pred_fallthru
      _
    // Predicated region
    $region42: #{_ffn_call.1} parent=1 // pred_check
      _
    $region43: #{_ffn_call.1} parent=1 // pred_check_branch
      %296 = sbr.rel (0) target = $region45
    $region44: #{_ffn_call.1} parent=1 // pred_region
      %297 = dma.done [#allocation4], 256
    $region45: #{_ffn_call.1} parent=1 // pred_fallthru
      _
    %298 = vsyncpa [#allocation3], 1
    %299 = vsyncpa [#allocation6], 1
    %300 = vsyncpa [#allocation4], 1

// kernel: _ffn_call.1
$region0: #{_ffn_call.1}
  #allocation0 [shape = 'u32[]', space=smem, size = 0x4, offset = 0x4, fixed_abs, tag = 'smem constant byte address 0x4 - core index']
  #allocation1 [shape = 'u32[144,128]{1,0:T(1,128)}', space=vmem, size = 0x12000, scoped, tag = 'internal scratch']
  %s0 = inlined_call_operand.hbm [shape: f32[16,128], index: 0, kind: input, shape index: {}]
  %s1 = inlined_call_operand.hbm [shape: f32[128,256], index: 1, kind: input, shape index: {}]
  %s2 = inlined_call_operand.vmem [shape: f32[1,256], index: 2, kind: input, shape index: {}]
  %s3 = inlined_call_operand.hbm [shape: f32[256,128], index: 3, kind: input, shape index: {}]
  %s4 = inlined_call_operand.vmem [shape: f32[1,128], index: 4, kind: input, shape index: {}]
  %s5 = inlined_call_operand.hbm [shape: f32[16,128], index: 5, kind: output, shape index: {}]
  %s6 = sld [smem:[#allocation0]]
  $region46: #{_ffn_call.1} parent=0
    _
  %s8 = ssub.s32 1, %s6
  %s9 = scalar_select 0, %s8, %s6
  $region1: #{_ffn_call.1} parent=0
    #allocation2 [shape = 'u8[8192]{0}', space=vmem, size = 0x2000, scoped, tag = 'input window, operand 0, single buffered']
    #allocation3 [shape = 's32[1]{0}', space=sflag, size = 0x4, scoped, tag = 'scoped memory for _ffn_call.1']
    #allocation4 [shape = 's32[1]{0}', space=sflag, size = 0x4, scoped, tag = 'scoped memory for _ffn_call.1']
    #allocation5 [shape = 'u8[131072]{0}', space=vmem, size = 0x20000, scoped, tag = 'input window, operand 1, single buffered']
    #allocation6 [shape = 's32[1]{0}', space=sflag, size = 0x4, scoped, tag = 'scoped memory for _ffn_call.1']
    #allocation7 [shape = 'u8[131072]{0}', space=vmem, size = 0x20000, scoped, tag = 'input window, operand 3, single buffered']
    #allocation8 [shape = 'u8[8192]{0}', space=vmem, size = 0x2000, scoped, tag = 'output window, operand 0, single buffered']
    %10 = vsyncpa [#allocation3], 0
    %11 = vsyncpa [#allocation6], 0
    %12 = vsyncpa [#allocation4], 0
    // Predicated region
    $region2: #{_ffn_call.1} parent=1 // pred_check
      _
    $region3: #{_ffn_call.1} parent=1 // pred_check_branch
      %14 = sbr.rel (0) target = $region5
    $region4: #{_ffn_call.1} parent=1 // pred_region
      %s16 = ssub.s32 256, 256
      %17 = vsyncadd [#allocation3], %s16
      %s18 = sshll.u32 [#allocation2], 4
      %s19 = int_to_ptr.vmem [resolvable:$true] %s18
      %24 = dma.hbm_to_vmem [thread:$0]  %s0, 256, %s19, [#allocation3], 128, 128, 8
    $region5: #{_ffn_call.1} parent=1 // pred_fallthru
      _
    // Predicated region
    $region6: #{_ffn_call.1} parent=1 // pred_check
      _
    $region7: #{_ffn_call.1} parent=1 // pred_check_branch
      %26 = sbr.rel (0) target = $region9
    $region8: #{_ffn_call.1} parent=1 // pred_region
      %s28 = ssub.s32 4096, 4096
      %29 = vsyncadd [#allocation6], %s28
      %s30 = sshll.u32 [#allocation5], 4
      %s31 = int_to_ptr.vmem [resolvable:$true] %s30
      %36 = dma.hbm_to_vmem [thread:$0]  %s1, 4096, %s31, [#allocation6], 256, 256, 16
    $region9: #{_ffn_call.1} parent=1 // pred_fallthru
      _
    // Predicated region
    $region10: #{_ffn_call.1} parent=1 // pred_check
      _
    $region11: #{_ffn_call.1} parent=1 // pred_check_branch
      %38 = sbr.rel (0) target = $region13
    $region12: #{_ffn_call.1} parent=1 // pred_region
      _
    $region13: #{_ffn_call.1} parent=1 // pred_fallthru
      _
    // Predicated region
    $region14: #{_ffn_call.1} parent=1 // pred_check
      _
    $region15: #{_ffn_call.1} parent=1 // pred_check_branch
      %40 = sbr.rel (0) target = $region17
    $region16: #{_ffn_call.1} parent=1 // pred_region
      %s42 = ssub.s32 4096, 4096
      %43 = vsyncadd [#allocation6], %s42
      %s44 = sshll.u32 [#allocation7], 4
      %s45 = int_to_ptr.vmem [resolvable:$true] %s44
      %50 = dma.hbm_to_vmem [thread:$0]  %s3, 4096, %s45, [#allocation6], 128, 128, 8
    $region17: #{_ffn_call.1} parent=1 // pred_fallthru
      _
    // Predicated region
    $region18: #{_ffn_call.1} parent=1 // pred_check
      _
    $region19: #{_ffn_call.1} parent=1 // pred_check_branch
      %52 = sbr.rel (0) target = $region21
    $region20: #{_ffn_call.1} parent=1 // pred_region
      _
    $region21: #{_ffn_call.1} parent=1 // pred_fallthru
      _
    // Predicated region
    $region22: #{_ffn_call.1} parent=1 // pred_check
      _
    $region23: #{_ffn_call.1} parent=1 // pred_check_branch
      %54 = sbr.rel (0) target = $region25
    $region24: #{_ffn_call.1} parent=1 // pred_region
      %55 = dma.done [#allocation3], 256
    $region25: #{_ffn_call.1} parent=1 // pred_fallthru
      _
    // Predicated region
    $region26: #{_ffn_call.1} parent=1 // pred_check
      _
    $region27: #{_ffn_call.1} parent=1 // pred_check_branch
      %57 = sbr.rel (0) target = $region29
    $region28: #{_ffn_call.1} parent=1 // pred_region
      %58 = dma.done [#allocation6], 4096
    $region29: #{_ffn_call.1} parent=1 // pred_fallthru
      _
    // Predicated region
    $region30: #{_ffn_call.1} parent=1 // pred_check
      _
    $region31: #{_ffn_call.1} parent=1 // pred_check_branch
      %60 = sbr.rel (0) target = $region33
    $region32: #{_ffn_call.1} parent=1 // pred_region
      %61 = dma.done [#allocation6], 4096
    $region33: #{_ffn_call.1} parent=1 // pred_fallthru
      _
    %p63 = scmp.eq.s32.totalorder 0, 0
    // Predicated region
    $region34: #{_ffn_call.1} parent=1 // pred_check
      %p64 = pneg %p63
    $region35: #{_ffn_call.1} parent=1 // pred_check_branch
      %66 = sbr.rel (%p64) target = $region37
    $region36: #{_ffn_call.1} parent=1 // pred_region
      %v67 = vld [vmem:[%s4] sm:$0x1]
      %v69 = vlaneseq
      %v70 = vshrl.u32 %v69, 7
      %v71 = vsub.s32 0, %v70
      %v72 = vrot.slane %v67, %v71
      %74 = vst [vmem:[#allocation8] sm:$0xff] %v72
      %75 = vst [vmem:[#allocation8 + $0x8] sm:$0xff] %v72
    $region37: #{_ffn_call.1} parent=1 // pred_fallthru
      _
    %v76 = vld [vmem:[#allocation2] sm:$0xff]
    %v77 = vld [vmem:[#allocation2 + $0x8] sm:$0xff]
    %v78 = vpack.c.bf16 %v77, %v76
    %v79 = vld [vmem:[#allocation5] sm:$0xff]
    %v80 = vld [vmem:[#allocation5 + $0x8] sm:$0xff]
    %v81 = vld [vmem:[#allocation5 + $0x10] sm:$0xff]
    %v82 = vld [vmem:[#allocation5 + $0x18] sm:$0xff]
    %v83 = vld [vmem:[#allocation5 + $0x20] sm:$0xff]
    %v84 = vld [vmem:[#allocation5 + $0x28] sm:$0xff]
    %v85 = vld [vmem:[#allocation5 + $0x30] sm:$0xff]
    %v86 = vld [vmem:[#allocation5 + $0x38] sm:$0xff]
    %v87 = vld [vmem:[#allocation5 + $0x40] sm:$0xff]
    %v88 = vld [vmem:[#allocation5 + $0x48] sm:$0xff]
    %v89 = vld [vmem:[#allocation5 + $0x50] sm:$0xff]
    %v90 = vld [vmem:[#allocation5 + $0x58] sm:$0xff]
    %v91 = vld [vmem:[#allocation5 + $0x60] sm:$0xff]
    %v92 = vld [vmem:[#allocation5 + $0x68] sm:$0xff]
    %v93 = vld [vmem:[#allocation5 + $0x70] sm:$0xff]
    %v94 = vld [vmem:[#allocation5 + $0x78] sm:$0xff]
    %v95 = vld [vmem:[#allocation5 + $0x80] sm:$0xff]
    %v96 = vld [vmem:[#allocation5 + $0x88] sm:$0xff]
    %v97 = vld [vmem:[#allocation5 + $0x90] sm:$0xff]
    %v98 = vld [vmem:[#allocation5 + $0x98] sm:$0xff]
    %v99 = vld [vmem:[#allocation5 + $0xa0] sm:$0xff]
    %v100 = vld [vmem:[#allocation5 + $0xa8] sm:$0xff]
    %v101 = vld [vmem:[#allocation5 + $0xb0] sm:$0xff]
    %v102 = vld [vmem:[#allocation5 + $0xb8] sm:$0xff]
    %v103 = vld [vmem:[#allocation5 + $0xc0] sm:$0xff]
    %v104 = vld [vmem:[#allocation5 + $0xc8] sm:$0xff]
    %v105 = vld [vmem:[#allocation5 + $0xd0] sm:$0xff]
    %v106 = vld [vmem:[#allocation5 + $0xd8] sm:$0xff]
    %v107 = vld [vmem:[#allocation5 + $0xe0] sm:$0xff]
    %v108 = vld [vmem:[#allocation5 + $0xe8] sm:$0xff]
    %v109 = vld [vmem:[#allocation5 + $0xf0] sm:$0xff]
    %v110 = vld [vmem:[#allocation5 + $0xf8] sm:$0xff]
    %v111 = vpack.c.bf16 %v81, %v79
    %v112 = vpack.c.bf16 %v82, %v80
    %v113 = vpack.c.bf16 %v85, %v83
    %v114 = vpack.c.bf16 %v86, %v84
    %v115 = vpack.c.bf16 %v89, %v87
    %v116 = vpack.c.bf16 %v90, %v88
    %v117 = vpack.c.bf16 %v93, %v91
    %v118 = vpack.c.bf16 %v94, %v92
    %v119 = vpack.c.bf16 %v97, %v95
    %v120 = vpack.c.bf16 %v98, %v96
    %v121 = vpack.c.bf16 %v101, %v99
    %v122 = vpack.c.bf16 %v102, %v100
    %v123 = vpack.c.bf16 %v105, %v103
    %v124 = vpack.c.bf16 %v106, %v104
    %v125 = vpack.c.bf16 %v109, %v107
    %v126 = vpack.c.bf16 %v110, %v108
    %v127 = vld [vmem:[%s2] sm:$0x3]
    %v129 = vlaneseq
    %v130 = vshrl.u32 %v129, 7
    %v131 = vsub.s32 0, %v130
    %v132 = vrot.slane %v127, %v131
    %v133 = vlaneseq
    %v134 = vshrl.u32 %v133, 7
    %v135 = vsub.s32 1, %v134
    %v136 = vrot.slane %v127, %v135
    %139 = vmatprep.subr.bf16.mxu0 %v126
    %140 = vmatpush1.bf16.msra.mxu0 %v125
    %141 = vmatprep.subr.bf16.mxu0 %v124
    %142 = vmatpush1.bf16.msra.mxu0 %v123
    %143 = vmatprep.subr.bf16.mxu0 %v122
    %144 = vmatpush1.bf16.msra.mxu0 %v121
    %145 = vmatprep.subr.bf16.mxu0 %v120
    %146 = vmatpush1.bf16.msra.mxu0 %v119
    %147 = vmatprep.subr.bf16.mxu0 %v118
    %148 = vmatpush1.bf16.msra.mxu0 %v117
    %149 = vmatprep.subr.bf16.mxu0 %v116
    %150 = vmatpush1.bf16.msra.mxu0 %v115
    %151 = vmatprep.subr.bf16.mxu0 %v114
    %152 = vmatpush1.bf16.msra.mxu0 %v113
    %153 = vmatprep.subr.bf16.mxu0 %v112
    %154 = vmatpush1.bf16.msra.mxu0 %v111
    %155 = vmatprep.subr.bf16.mxu0 0
    %156 = vmatpush2.bf16.msra.mxu0 0
    %157 = vmatprep.subr.bf16.mxu0 0
    %158 = vmatpush2.bf16.msra.mxu0 0
    %159 = vmatprep.subr.bf16.mxu0 0
    %160 = vmatpush2.bf16.msra.mxu0 0
    %161 = vmatprep.subr.bf16.mxu0 0
    %162 = vmatpush2.bf16.msra.mxu0 0
    %163 = vmatprep.subr.bf16.mxu0 0
    %164 = vmatpush2.bf16.msra.mxu0 0
    %165 = vmatprep.subr.bf16.mxu0 0
    %166 = vmatpush2.bf16.msra.mxu0 0
    %167 = vmatprep.subr.bf16.mxu0 0
    %168 = vmatpush2.bf16.msra.mxu0 0
    %169 = vmatprep.subr.bf16.mxu0 0
    %170 = vmatpush2.bf16.msra.mxu0 0
    %171 = vmatprep.mubr.bf16.mxu0 0
    %172 = vmatmul.mubr.bf16.gmra.mxu0 %v78
    %v173 = vpop.f32.mrf.mxu0
    %v174 = vadd.f32 %v132, %v173
    %v175 = vpop.f32.mrf.mxu0
    %v176 = vadd.f32 %v136, %v175
    %v177 = vpop.f32.mrf.mxu0
    %v178 = vadd.f32 %v132, %v177
    %v179 = vpop.f32.mrf.mxu0
    %v180 = vadd.f32 %v136, %v179
    %181 = vdwg.mxu0
    %v182 = vmax.f32 %v174, 0.0
    %v183 = vmax.f32 %v176, 0.0
    %v184 = vmax.f32 %v178, 0.0
    %v185 = vmax.f32 %v180, 0.0
    %v186 = vld [vmem:[#allocation8] sm:$0xff]
    %v187 = vld [vmem:[#allocation8 + $0x8] sm:$0xff]
    %v188 = vpack.c.bf16 %v184, %v182
    %v189 = vpack.c.bf16 %v185, %v183
    %v190 = vld [vmem:[#allocation7] sm:$0xff]
    %v191 = vld [vmem:[#allocation7 + $0x8] sm:$0xff]
    %v192 = vld [vmem:[#allocation7 + $0x10] sm:$0xff]
    %v193 = vld [vmem:[#allocation7 + $0x18] sm:$0xff]
    %v194 = vld [vmem:[#allocation7 + $0x20] sm:$0xff]
    %v195 = vld [vmem:[#allocation7 + $0x28] sm:$0xff]
    %v196 = vld [vmem:[#allocation7 + $0x30] sm:$0xff]
    %v197 = vld [vmem:[#allocation7 + $0x38] sm:$0xff]
    %v198 = vld [vmem:[#allocation7 + $0x40] sm:$0xff]
    %v199 = vld [vmem:[#allocation7 + $0x48] sm:$0xff]
    %v200 = vld [vmem:[#allocation7 + $0x50] sm:$0xff]
    %v201 = vld [vmem:[#allocation7 + $0x58] sm:$0xff]
    %v202 = vld [vmem:[#allocation7 + $0x60] sm:$0xff]
    %v203 = vld [vmem:[#allocation7 + $0x68] sm:$0xff]
    %v204 = vld [vmem:[#allocation7 + $0x70] sm:$0xff]
    %v205 = vld [vmem:[#allocation7 + $0x78] sm:$0xff]
    %v206 = vld [vmem:[#allocation7 + $0x80] sm:$0xff]
    %v207 = vld [vmem:[#allocation7 + $0x88] sm:$0xff]
    %v208 = vld [vmem:[#allocation7 + $0x90] sm:$0xff]
    %v209 = vld [vmem:[#allocation7 + $0x98] sm:$0xff]
    %v210 = vld [vmem:[#allocation7 + $0xa0] sm:$0xff]
    %v211 = vld [vmem:[#allocation7 + $0xa8] sm:$0xff]
    %v212 = vld [vmem:[#allocation7 + $0xb0] sm:$0xff]
    %v213 = vld [vmem:[#allocation7 + $0xb8] sm:$0xff]
    %v214 = vld [vmem:[#allocation7 + $0xc0] sm:$0xff]
    %v215 = vld [vmem:[#allocation7 + $0xc8] sm:$0xff]
    %v216 = vld [vmem:[#allocation7 + $0xd0] sm:$0xff]
    %v217 = vld [vmem:[#allocation7 + $0xd8] sm:$0xff]
    %v218 = vld [vmem:[#allocation7 + $0xe0] sm:$0xff]
    %v219 = vld [vmem:[#allocation7 + $0xe8] sm:$0xff]
    %v220 = vld [vmem:[#allocation7 + $0xf0] sm:$0xff]
    %v221 = vld [vmem:[#allocation7 + $0xf8] sm:$0xff]
    %v222 = vpack.c.bf16 %v191, %v190
    %v223 = vpack.c.bf16 %v193, %v192
    %v224 = vpack.c.bf16 %v195, %v194
    %v225 = vpack.c.bf16 %v197, %v196
    %v226 = vpack.c.bf16 %v199, %v198
    %v227 = vpack.c.bf16 %v201, %v200
    %v228 = vpack.c.bf16 %v203, %v202
    %v229 = vpack.c.bf16 %v205, %v204
    %v230 = vpack.c.bf16 %v207, %v206
    %v231 = vpack.c.bf16 %v209, %v208
    %v232 = vpack.c.bf16 %v211, %v210
    %v233 = vpack.c.bf16 %v213, %v212
    %v234 = vpack.c.bf16 %v215, %v214
    %v235 = vpack.c.bf16 %v217, %v216
    %v236 = vpack.c.bf16 %v219, %v218
    %v237 = vpack.c.bf16 %v221, %v220
    %238 = vmatprep.subr.bf16.mxu0 0
    %239 = vmatpush1.bf16.msra.mxu0 %v229
    %240 = vmatprep.subr.bf16.mxu0 0
    %241 = vmatpush1.bf16.msra.mxu0 %v228
    %242 = vmatprep.subr.bf16.mxu0 0
    %243 = vmatpush1.bf16.msra.mxu0 %v227
    %244 = vmatprep.subr.bf16.mxu0 0
    %245 = vmatpush1.bf16.msra.mxu0 %v226
    %246 = vmatprep.subr.bf16.mxu0 0
    %247 = vmatpush1.bf16.msra.mxu0 %v225
    %248 = vmatprep.subr.bf16.mxu0 0
    %249 = vmatpush1.bf16.msra.mxu0 %v224
    %250 = vmatprep.subr.bf16.mxu0 0
    %251 = vmatpush1.bf16.msra.mxu0 %v223
    %252 = vmatprep.subr.bf16.mxu0 0
    %253 = vmatpush1.bf16.msra.mxu0 %v222
    %254 = vmatprep.subr.bf16.mxu0 0
    %255 = vmatpush2.bf16.msra.mxu0 %v237
    %256 = vmatprep.subr.bf16.mxu0 0
    %257 = vmatpush2.bf16.msra.mxu0 %v236
    %258 = vmatprep.subr.bf16.mxu0 0
    %259 = vmatpush2.bf16.msra.mxu0 %v235
    %260 = vmatprep.subr.bf16.mxu0 0
    %261 = vmatpush2.bf16.msra.mxu0 %v234
    %262 = vmatprep.subr.bf16.mxu0 0
    %263 = vmatpush2.bf16.msra.mxu0 %v233
    %264 = vmatprep.subr.bf16.mxu0 0
    %265 = vmatpush2.bf16.msra.mxu0 %v232
    %266 = vmatprep.subr.bf16.mxu0 0
    %267 = vmatpush2.bf16.msra.mxu0 %v231
    %268 = vmatprep.subr.bf16.mxu0 0
    %269 = vmatpush2.bf16.msra.mxu0 %v230
    %270 = vmatprep.mubr.bf16.mxu0 %v189
    %271 = vmatmul.mubr.bf16.gmra.mxu0 %v188
    %v272 = vpop.f32.mrf.mxu0
    %v273 = vadd.f32 0.0, %v272
    %v274 = vpop.f32.mrf.mxu0
    %v275 = vpop.f32.mrf.mxu0
    %v276 = vadd.f32 0.0, %v275
    %v277 = vpop.f32.mrf.mxu0
    %278 = vdwg.mxu0
    %v279 = vadd.f32 %v186, %v273
    %v280 = vadd.f32 %v187, %v276
    %281 = vst [vmem:[#allocation8] sm:$0xff] %v279
    %282 = vst [vmem:[#allocation8 + $0x8] sm:$0xff] %v280
    // Predicated region
    $region38: #{_ffn_call.1} parent=1 // pred_check
      _
    $region39: #{_ffn_call.1} parent=1 // pred_check_branch
      %284 = sbr.rel (0) target = $region41
    $region40: #{_ffn_call.1} parent=1 // pred_region
      %s286 = ssub.s32 256, 256
      %287 = vsyncadd [#allocation4], %s286
      %s288 = sshll.u32 [#allocation8], 4
      %s289 = int_to_ptr.vmem [resolvable:$true] %s288
      %294 = dma.vmem_to_hbm [thread:$0]  %s289, 256, %s5, [#allocation4], 128, 128, 8
    $region41: #{_ffn_call.1} parent=1 // pred_fallthru
      _
    // Predicated region
    $region42: #{_ffn_call.1} parent=1 // pred_check
      _
    $region43: #{_ffn_call.1} parent=1 // pred_check_branch
      %296 = sbr.rel (0) target = $region45
    $region44: #{_ffn_call.1} parent=1 // pred_region
      %297 = dma.done [#allocation4], 256
    $region45: #{_ffn_call.1} parent=1 // pred_fallthru
      _
    %298 = vsyncpa [#allocation3], 1
    %299 = vsyncpa [#allocation6], 1
    %300 = vsyncpa [#allocation4], 1

</llo_original>
